<compile_context>
chip_gen: v6e
topology: v6e:2x2x1
jax: 0.10.0
libtpu: 0.0.40
codegen_flags: <defaults>
</compile_context>

<pallas_src>
import jax
import jax.numpy as jnp
from jax.experimental import pallas as pl
from jax.experimental.pallas import tpu as pltpu

GAMMA = 0.8           # DFR input gain (stand-in cell)
ETA = 0.5             # DFR feedback gain (stand-in cell)
OUT_LANES = 128       # lane-dense output width
F32_EPS = float(jnp.finfo(jnp.float32).eps)


def _make_dfr_kernel(T, TBg, G, H):
    """Kernel factory; T/TBg/G/H are static tile parameters."""
    GH = G * H
    seg_shift = (1 - H) % GH if GH > 1 else 0

    def kernel(stats_ref, x_ref, prev_ref, w1p_ref, w2p_ref, b2p_ref, out_ref):
        # stats_ref : (1, 2) f32 SMEM     per-tensor observer [min, max]
        # x_ref     : (T, TBg, GH) f32    time-major, G batch rows packed/lanes
        # prev_ref  : (TBg, GH) f32       initial reservoir state (packed)
        # w1p_ref   : (GH, G*F) f32       block-diag fake-quantized fc1 weight
        # w2p_ref   : (G*F, 128) f32      block-diag fc2 weight, lane-padded
        # b2p_ref   : (1, 128) f32        fc2 bias, packed + lane-padded
        # out_ref   : (TBg, 128) f32      packed outputs in columns [0, 2*G)

        # ---- FakeQuantize affine qparams (quant_min=0, quant_max=255) ----
        xmin = stats_ref[0, 0]
        xmax = stats_ref[0, 1]
        scale = jnp.maximum((xmax - xmin) / 255.0, F32_EPS)
        zp = jnp.clip(jnp.round(-xmin / scale), 0.0, 255.0)

        if G > 1:
            lane = jax.lax.broadcasted_iota(jnp.int32, (TBg, GH), 1)
            seg_head = (lane % H) == 0          # hoisted out of the T-loop

        def dfr_step(xt, state):
            # Input fake-quant depends only on x -> off the state dependency
            # chain; VPU work hides under the in-flight EUP sigmoid.
            xq = (jnp.clip(jnp.round(xt / scale) + zp, 0.0, 255.0) - zp) * scale
            drive = GAMMA * xq
            if G > 1:
                # Per-H-segment rotate-by-1 (virtual-node delay line) built
                # from two full-lane rolls + a select (XLU has slack here).
                fb = jnp.where(seg_head,
                               pltpu.roll(state, shift=seg_shift, axis=1),
                               pltpu.roll(state, shift=1, axis=1))
            else:
                fb = pltpu.roll(state, shift=1, axis=1)
            return jax.nn.sigmoid(drive + ETA * fb)

        state = prev_ref[...]                                  # (TBg, GH)
        if T <= 16:
            for t in range(T):                  # full unroll, static indices
                state = dfr_step(x_ref[t], state)
        else:
            state = jax.lax.fori_loop(
                0, T, lambda t, s: dfr_step(x_ref[t], s), state, unroll=8)

        # ---- fc1 (quantized weight, no bias) + ReLU + fc2 (+bias) on the MXU
        # via block-diagonal packed weights: no lane->sublane unpack needed,
        # and the store is a lane-dense (TBg, 128) block.
        h = jax.lax.dot_general(state, w1p_ref[...], (((1,), (0,)), ((), ())),
                                preferred_element_type=jnp.float32)
        h = jnp.maximum(h, 0.0)                                # (TBg, G*F)
        out = jax.lax.dot_general(h, w2p_ref[...], (((1,), (0,)), ((), ())),
                                  preferred_element_type=jnp.float32)
        out_ref[...] = out + b2p_ref[...]                      # (TBg, 128)

    return kernel


@jax.jit
def ori_qdfr_system(batch_seq_x, prev_out, w_fc1, w_fc2, b_fc2,
                    observer_stats=None):
    """batch_seq_x: (B, T, H), prev_out: (B, H),
    w_fc1: (F, H) torch layout, w_fc2: (2, F) torch layout, b_fc2: (2,),
    observer_stats: optional (2,) carried observer [min, max]."""
    B, T, H = batch_seq_x.shape
    F = w_fc1.shape[0]

    # ---- FakeQuantize observer stats (range must include 0) ----
    if observer_stats is None:
        x32 = batch_seq_x.astype(jnp.float32)
        xmin = jnp.minimum(jnp.min(x32), 0.0)
        xmax = jnp.maximum(jnp.max(x32), 0.0)
    else:
        xmin = jnp.minimum(observer_stats[0].astype(jnp.float32), 0.0)
        xmax = jnp.maximum(observer_stats[1].astype(jnp.float32), 0.0)
    stats = jnp.stack([xmin, xmax]).reshape(1, 2).astype(jnp.float32)

    # ---- lane packing factor: G batch rows share the 128 lanes ----
    G = max(1, min(128 // max(H, 1), OUT_LANES // 2))
    GH, GF = G * H, G * F

    # ---- fc1 weight fake-quant (grid-invariant) + block-diag packing ----
    eye_g = jnp.eye(G, dtype=jnp.float32)
    w1 = w_fc1.astype(jnp.float32)                               # (F, H)
    w1_scale = jnp.maximum(jnp.max(jnp.abs(w1)) / 127.0, F32_EPS)
    w1q = jnp.clip(jnp.round(w1 / w1_scale), -128.0, 127.0) * w1_scale
    w1_pack = jnp.kron(eye_g, w1q.T)                             # (GH, GF)

    w2 = w_fc2.astype(jnp.float32)                               # (2, F)
    w2_blk = jnp.kron(eye_g, w2.T)                               # (GF, 2*G)
    w2_pack = jnp.zeros((GF, OUT_LANES), jnp.float32).at[:, :2 * G].set(w2_blk)
    b2_pack = jnp.zeros((1, OUT_LANES), jnp.float32).at[0, :2 * G].set(
        jnp.tile(b_fc2.astype(jnp.float32), G))

    # ---- batch tiling: VMEM-budget-aware, sublane-aligned, megacore-aware ----
    Bg = pl.cdiv(B, G)                       # packed group-rows needed
    try:
        vmem_cap = int(getattr(pltpu.get_tpu_info(), "vmem_capacity_bytes",
                               64 * 1024 * 1024))
    except Exception:
        vmem_cap = 64 * 1024 * 1024          # conservative (v7x per-TC VMEM)

    fixed_bytes = 2 * 4 * (GH * GF + GF * OUT_LANES + OUT_LANES)   # weights
    per_row_bytes = 2 * 4 * (T * GH + GH + OUT_LANES)    # x/prev/out dbl-buf
    budget = int(0.7 * vmem_cap)
    TBg = max(1, (budget - fixed_bytes) // per_row_bytes)
    TBg = min(TBg, Bg)
    if Bg >= 16:
        # >=2 grid steps so ("parallel",) shards across both v7x TensorCores;
        # negligible (~0.35us/step) cost on single-TC v5e/v6e.
        TBg = min(TBg, -(-Bg // 2))
    if Bg >= 8:
        TBg = max(8, (TBg // 8) * 8)         # sublane-aligned block rows
    else:
        TBg = Bg                             # tiny batch: single full block
    n_blk = pl.cdiv(Bg, TBg)
    Bg_pad = n_blk * TBg
    B_pad = Bg_pad * G

    needed = fixed_bytes + per_row_bytes * TBg
    vmem_limit = int(min(vmem_cap * 9 // 10,
                         max(2 * needed, 32 * 1024 * 1024)))

    # ---- relayout: zero-pad batch, pack G rows per lane group, time-major ----
    x = batch_seq_x.astype(jnp.float32)
    prev = prev_out.astype(jnp.float32)
    if B_pad != B:
        x = jnp.pad(x, ((0, B_pad - B), (0, 0), (0, 0)))
        prev = jnp.pad(prev, ((0, B_pad - B), (0, 0)))
    xp = x.reshape(Bg_pad, G, T, H).transpose(2, 0, 1, 3).reshape(T, Bg_pad, GH)
    pp = prev.reshape(Bg_pad, GH)

    kernel = _make_dfr_kernel(T, TBg, G, H)
    out_packed = pl.pallas_call(
        kernel,
        out_shape=jax.ShapeDtypeStruct((Bg_pad, OUT_LANES), jnp.float32),
        grid=(n_blk,),
        in_specs=[
            pl.BlockSpec(memory_space=pltpu.MemorySpace.SMEM),       # stats
            pl.BlockSpec((T, TBg, GH), lambda i: (0, i, 0)),         # x packed
            pl.BlockSpec((TBg, GH), lambda i: (i, 0)),               # prev packed
            pl.BlockSpec((GH, GF), lambda i: (0, 0)),                # fc1 W packed
            pl.BlockSpec((GF, OUT_LANES), lambda i: (0, 0)),         # fc2 W packed
            pl.BlockSpec((1, OUT_LANES), lambda i: (0, 0)),          # fc2 bias
        ],
        out_specs=pl.BlockSpec((TBg, OUT_LANES), lambda i: (i, 0)),
        compiler_params=pltpu.CompilerParams(
            dimension_semantics=("parallel",),
            vmem_limit_bytes=vmem_limit),
    )(stats, xp, pp, w1_pack, w2_pack, b2_pack)

    # Column g*2 + o of packed group-row bg is output o of batch row bg*G + g.
    return out_packed[:, :2 * G].reshape(B_pad, 2)[:B]


if __name__ == "__main__":
    # Small shapes consistent with the module (n_hidden -> H, n_fc -> F).
    B, T, H, F = 8, 8, 16, 32

    key = jax.random.PRNGKey(0)
    k_x, k_w1, k_w2, k_b2 = jax.random.split(key, 4)

    batch_seq_x = jax.random.normal(k_x, (B, T, H), dtype=jnp.float32)
    prev_out = jnp.zeros((B, H), dtype=jnp.float32)

    # Deterministic parameter init (uniform like torch Linear default).
    w_fc1 = jax.random.uniform(k_w1, (F, H), minval=-1.0, maxval=1.0) / jnp.sqrt(H * 1.0)
    w_fc2 = jax.random.uniform(k_w2, (2, F), minval=-1.0, maxval=1.0) / jnp.sqrt(F * 1.0)
    b_fc2 = jax.random.uniform(k_b2, (2,), minval=-1.0, maxval=1.0) / jnp.sqrt(F * 1.0)

    out = ori_qdfr_system(batch_seq_x, prev_out, w_fc1, w_fc2, b_fc2)
    jax.block_until_ready(out)
    assert out.shape == (B, 2) and out.dtype == jnp.float32
    print("KERNEL_OK")
</pallas_src>

<mosaic_0001>
module attributes {stable_mosaic.version = 11 : i64} {
  func.func @kernel(%arg0: i32, %arg1: memref<1x2xf32, #tpu.memory_space<smem>>, %arg2: memref<8x1x128xf32, #tpu.memory_space<vmem>>, %arg3: memref<1x128xf32, #tpu.memory_space<vmem>>, %arg4: memref<128x256xf32, #tpu.memory_space<vmem>>, %arg5: memref<256x128xf32, #tpu.memory_space<vmem>>, %arg6: memref<1x128xf32, #tpu.memory_space<vmem>>, %arg7: memref<1x128xf32, #tpu.memory_space<vmem>>) attributes {dimension_semantics = [#tpu.dimension_semantics<parallel>], iteration_bounds = array<i64: 1>, scalar_prefetch = 0 : i64, scratch_operands = 0 : i64, tpu.core_type = #tpu.core_type<tc>, window_params = [{transform_indices = @transform_0, window_bounds = array<i64: 1, 2>}, {transform_indices = @transform_1, window_bounds = array<i64: 8, 1, 128>}, {transform_indices = @transform_2, window_bounds = array<i64: 1, 128>}, {pipeline_mode = #tpu.pipeline_mode<synchronous>, transform_indices = @transform_3, window_bounds = array<i64: 128, 256>}, {pipeline_mode = #tpu.pipeline_mode<synchronous>, transform_indices = @transform_4, window_bounds = array<i64: 256, 128>}, {pipeline_mode = #tpu.pipeline_mode<synchronous>, transform_indices = @transform_5, window_bounds = array<i64: 1, 128>}, {transform_indices = @transform_6, window_bounds = array<i64: 1, 128>}]} {
    %c0 = arith.constant 0 : index
    %c0_0 = arith.constant 0 : index
    %0 = memref.load %arg1[%c0, %c0_0] : memref<1x2xf32, #tpu.memory_space<smem>>
    %c0_1 = arith.constant 0 : index
    %c1 = arith.constant 1 : index
    %1 = memref.load %arg1[%c0_1, %c1] : memref<1x2xf32, #tpu.memory_space<smem>>
    %2 = arith.subf %1, %0 : f32
    %cst = arith.constant 2.550000e+02 : f32
    %3 = arith.divf %2, %cst : f32
    %cst_2 = arith.constant 1.1920929E-7 : f32
    %4 = arith.maximumf %3, %cst_2 : f32
    %cst_3 = arith.constant 0.000000e+00 : f32
    %5 = arith.subf %cst_3, %0 : f32
    %6 = arith.divf %5, %4 : f32
    %7 = math.roundeven %6 : f32
    %cst_4 = arith.constant 0.000000e+00 : f32
    %cst_5 = arith.constant 2.550000e+02 : f32
    %8 = arith.maximumf %cst_4, %7 : f32
    %9 = arith.minimumf %cst_5, %8 : f32
    %10 = tpu.iota {dimensions = array<i32: 1>} : vector<1x128xi32>
    %c16_i32 = arith.constant 16 : i32
    %c0_i32 = arith.constant 0 : i32
    %11 = arith.cmpi eq, %c16_i32, %c0_i32 : i32
    %c1_i32 = arith.constant 1 : i32
    %12 = arith.select %11, %c1_i32, %c16_i32 : i32
    %13 = vector.broadcast %12 : i32 to vector<1x128xi32>
    %14 = arith.remsi %10, %13 : vector<1x128xi32>
    %c0_i32_6 = arith.constant 0 : i32
    %15 = vector.broadcast %c0_i32_6 : i32 to vector<1x128xi32>
    %16 = arith.cmpi ne, %14, %15 : vector<1x128xi32>
    %c0_i32_7 = arith.constant 0 : i32
    %17 = vector.broadcast %c0_i32_7 : i32 to vector<1x128xi32>
    %18 = arith.cmpi slt, %14, %17 : vector<1x128xi32>
    %c0_i32_8 = arith.constant 0 : i32
    %19 = arith.cmpi slt, %12, %c0_i32_8 : i32
    %20 = vector.broadcast %19 : i1 to vector<1x128xi1>
    %21 = vector.broadcast %20 : vector<1x128xi1> to vector<1x128xi1>
    %22 = arith.xori %18, %21 : vector<1x128xi1>
    %23 = arith.andi %22, %16 : vector<1x128xi1>
    %24 = vector.broadcast %12 : i32 to vector<1x128xi32>
    %25 = arith.addi %14, %24 : vector<1x128xi32>
    %26 = arith.select %23, %25, %14 : vector<1x128xi1>, vector<1x128xi32>
    %c0_i32_9 = arith.constant 0 : i32
    %27 = vector.broadcast %c0_i32_9 : i32 to vector<1x128xi32>
    %28 = arith.cmpi eq, %26, %27 : vector<1x128xi32>
    %c0_10 = arith.constant 0 : index
    %c0_11 = arith.constant 0 : index
    %29 = vector.load %arg3[%c0_10, %c0_11] : memref<1x128xf32, #tpu.memory_space<vmem>>, vector<1x128xf32>
    %c0_12 = arith.constant 0 : index
    %c0_13 = arith.constant 0 : index
    %c0_14 = arith.constant 0 : index
    %30 = vector.load %arg2[%c0_12, %c0_13, %c0_14] : memref<8x1x128xf32, #tpu.memory_space<vmem>>, vector<1x1x128xf32>
    %31 = vector.shape_cast %30 : vector<1x1x128xf32> to vector<1x128xf32>
    %32 = vector.broadcast %4 : f32 to vector<1x128xf32>
    %33 = arith.divf %31, %32 : vector<1x128xf32>
    %34 = math.roundeven %33 : vector<1x128xf32>
    %35 = vector.broadcast %9 : f32 to vector<1x128xf32>
    %36 = arith.addf %34, %35 : vector<1x128xf32>
    %cst_15 = arith.constant 0.000000e+00 : f32
    %cst_16 = arith.constant 2.550000e+02 : f32
    %37 = vector.broadcast %cst_15 : f32 to vector<1x128xf32>
    %38 = arith.maximumf %37, %36 : vector<1x128xf32>
    %39 = vector.broadcast %cst_16 : f32 to vector<1x128xf32>
    %40 = arith.minimumf %39, %38 : vector<1x128xf32>
    %41 = vector.broadcast %9 : f32 to vector<1x128xf32>
    %42 = arith.subf %40, %41 : vector<1x128xf32>
    %43 = vector.broadcast %4 : f32 to vector<1x128xf32>
    %44 = arith.mulf %42, %43 : vector<1x128xf32>
    %cst_17 = arith.constant 8.000000e-01 : f32
    %45 = vector.broadcast %cst_17 : f32 to vector<1x128xf32>
    %46 = arith.mulf %45, %44 : vector<1x128xf32>
    %c113_i32 = arith.constant 113 : i32
    %47 = tpu.dynamic_rotate %29 by %c113_i32 dim 1 : vector<1x128xf32>, i32 -> vector<1x128xf32>
    %c1_i32_18 = arith.constant 1 : i32
    %48 = tpu.dynamic_rotate %29 by %c1_i32_18 dim 1 : vector<1x128xf32>, i32 -> vector<1x128xf32>
    %49 = arith.select %28, %47, %48 : vector<1x128xi1>, vector<1x128xf32>
    %cst_19 = arith.constant 5.000000e-01 : f32
    %50 = vector.broadcast %cst_19 : f32 to vector<1x128xf32>
    %51 = arith.mulf %50, %49 : vector<1x128xf32>
    %52 = arith.addf %46, %51 : vector<1x128xf32>
    %53 = arith.negf %52 : vector<1x128xf32>
    %54 = math.exp %53 : vector<1x128xf32>
    %cst_20 = arith.constant 1.000000e+00 : f32
    %55 = vector.broadcast %cst_20 : f32 to vector<1x128xf32>
    %56 = arith.addf %55, %54 : vector<1x128xf32>
    %57 = arith.divf %55, %56 : vector<1x128xf32>
    %c1_21 = arith.constant 1 : index
    %c0_22 = arith.constant 0 : index
    %c0_23 = arith.constant 0 : index
    %58 = vector.load %arg2[%c1_21, %c0_22, %c0_23] : memref<8x1x128xf32, #tpu.memory_space<vmem>>, vector<1x1x128xf32>
    %59 = vector.shape_cast %58 : vector<1x1x128xf32> to vector<1x128xf32>
    %60 = vector.broadcast %4 : f32 to vector<1x128xf32>
    %61 = arith.divf %59, %60 : vector<1x128xf32>
    %62 = math.roundeven %61 : vector<1x128xf32>
    %63 = vector.broadcast %9 : f32 to vector<1x128xf32>
    %64 = arith.addf %62, %63 : vector<1x128xf32>
    %cst_24 = arith.constant 0.000000e+00 : f32
    %cst_25 = arith.constant 2.550000e+02 : f32
    %65 = vector.broadcast %cst_24 : f32 to vector<1x128xf32>
    %66 = arith.maximumf %65, %64 : vector<1x128xf32>
    %67 = vector.broadcast %cst_25 : f32 to vector<1x128xf32>
    %68 = arith.minimumf %67, %66 : vector<1x128xf32>
    %69 = vector.broadcast %9 : f32 to vector<1x128xf32>
    %70 = arith.subf %68, %69 : vector<1x128xf32>
    %71 = vector.broadcast %4 : f32 to vector<1x128xf32>
    %72 = arith.mulf %70, %71 : vector<1x128xf32>
    %cst_26 = arith.constant 8.000000e-01 : f32
    %73 = vector.broadcast %cst_26 : f32 to vector<1x128xf32>
    %74 = arith.mulf %73, %72 : vector<1x128xf32>
    %c113_i32_27 = arith.constant 113 : i32
    %75 = tpu.dynamic_rotate %57 by %c113_i32_27 dim 1 : vector<1x128xf32>, i32 -> vector<1x128xf32>
    %c1_i32_28 = arith.constant 1 : i32
    %76 = tpu.dynamic_rotate %57 by %c1_i32_28 dim 1 : vector<1x128xf32>, i32 -> vector<1x128xf32>
    %77 = arith.select %28, %75, %76 : vector<1x128xi1>, vector<1x128xf32>
    %cst_29 = arith.constant 5.000000e-01 : f32
    %78 = vector.broadcast %cst_29 : f32 to vector<1x128xf32>
    %79 = arith.mulf %78, %77 : vector<1x128xf32>
    %80 = arith.addf %74, %79 : vector<1x128xf32>
    %81 = arith.negf %80 : vector<1x128xf32>
    %82 = math.exp %81 : vector<1x128xf32>
    %cst_30 = arith.constant 1.000000e+00 : f32
    %83 = vector.broadcast %cst_30 : f32 to vector<1x128xf32>
    %84 = arith.addf %83, %82 : vector<1x128xf32>
    %85 = arith.divf %83, %84 : vector<1x128xf32>
    %c2 = arith.constant 2 : index
    %c0_31 = arith.constant 0 : index
    %c0_32 = arith.constant 0 : index
    %86 = vector.load %arg2[%c2, %c0_31, %c0_32] : memref<8x1x128xf32, #tpu.memory_space<vmem>>, vector<1x1x128xf32>
    %87 = vector.shape_cast %86 : vector<1x1x128xf32> to vector<1x128xf32>
    %88 = vector.broadcast %4 : f32 to vector<1x128xf32>
    %89 = arith.divf %87, %88 : vector<1x128xf32>
    %90 = math.roundeven %89 : vector<1x128xf32>
    %91 = vector.broadcast %9 : f32 to vector<1x128xf32>
    %92 = arith.addf %90, %91 : vector<1x128xf32>
    %cst_33 = arith.constant 0.000000e+00 : f32
    %cst_34 = arith.constant 2.550000e+02 : f32
    %93 = vector.broadcast %cst_33 : f32 to vector<1x128xf32>
    %94 = arith.maximumf %93, %92 : vector<1x128xf32>
    %95 = vector.broadcast %cst_34 : f32 to vector<1x128xf32>
    %96 = arith.minimumf %95, %94 : vector<1x128xf32>
    %97 = vector.broadcast %9 : f32 to vector<1x128xf32>
    %98 = arith.subf %96, %97 : vector<1x128xf32>
    %99 = vector.broadcast %4 : f32 to vector<1x128xf32>
    %100 = arith.mulf %98, %99 : vector<1x128xf32>
    %cst_35 = arith.constant 8.000000e-01 : f32
    %101 = vector.broadcast %cst_35 : f32 to vector<1x128xf32>
    %102 = arith.mulf %101, %100 : vector<1x128xf32>
    %c113_i32_36 = arith.constant 113 : i32
    %103 = tpu.dynamic_rotate %85 by %c113_i32_36 dim 1 : vector<1x128xf32>, i32 -> vector<1x128xf32>
    %c1_i32_37 = arith.constant 1 : i32
    %104 = tpu.dynamic_rotate %85 by %c1_i32_37 dim 1 : vector<1x128xf32>, i32 -> vector<1x128xf32>
    %105 = arith.select %28, %103, %104 : vector<1x128xi1>, vector<1x128xf32>
    %cst_38 = arith.constant 5.000000e-01 : f32
    %106 = vector.broadcast %cst_38 : f32 to vector<1x128xf32>
    %107 = arith.mulf %106, %105 : vector<1x128xf32>
    %108 = arith.addf %102, %107 : vector<1x128xf32>
    %109 = arith.negf %108 : vector<1x128xf32>
    %110 = math.exp %109 : vector<1x128xf32>
    %cst_39 = arith.constant 1.000000e+00 : f32
    %111 = vector.broadcast %cst_39 : f32 to vector<1x128xf32>
    %112 = arith.addf %111, %110 : vector<1x128xf32>
    %113 = arith.divf %111, %112 : vector<1x128xf32>
    %c3 = arith.constant 3 : index
    %c0_40 = arith.constant 0 : index
    %c0_41 = arith.constant 0 : index
    %114 = vector.load %arg2[%c3, %c0_40, %c0_41] : memref<8x1x128xf32, #tpu.memory_space<vmem>>, vector<1x1x128xf32>
    %115 = vector.shape_cast %114 : vector<1x1x128xf32> to vector<1x128xf32>
    %116 = vector.broadcast %4 : f32 to vector<1x128xf32>
    %117 = arith.divf %115, %116 : vector<1x128xf32>
    %118 = math.roundeven %117 : vector<1x128xf32>
    %119 = vector.broadcast %9 : f32 to vector<1x128xf32>
    %120 = arith.addf %118, %119 : vector<1x128xf32>
    %cst_42 = arith.constant 0.000000e+00 : f32
    %cst_43 = arith.constant 2.550000e+02 : f32
    %121 = vector.broadcast %cst_42 : f32 to vector<1x128xf32>
    %122 = arith.maximumf %121, %120 : vector<1x128xf32>
    %123 = vector.broadcast %cst_43 : f32 to vector<1x128xf32>
    %124 = arith.minimumf %123, %122 : vector<1x128xf32>
    %125 = vector.broadcast %9 : f32 to vector<1x128xf32>
    %126 = arith.subf %124, %125 : vector<1x128xf32>
    %127 = vector.broadcast %4 : f32 to vector<1x128xf32>
    %128 = arith.mulf %126, %127 : vector<1x128xf32>
    %cst_44 = arith.constant 8.000000e-01 : f32
    %129 = vector.broadcast %cst_44 : f32 to vector<1x128xf32>
    %130 = arith.mulf %129, %128 : vector<1x128xf32>
    %c113_i32_45 = arith.constant 113 : i32
    %131 = tpu.dynamic_rotate %113 by %c113_i32_45 dim 1 : vector<1x128xf32>, i32 -> vector<1x128xf32>
    %c1_i32_46 = arith.constant 1 : i32
    %132 = tpu.dynamic_rotate %113 by %c1_i32_46 dim 1 : vector<1x128xf32>, i32 -> vector<1x128xf32>
    %133 = arith.select %28, %131, %132 : vector<1x128xi1>, vector<1x128xf32>
    %cst_47 = arith.constant 5.000000e-01 : f32
    %134 = vector.broadcast %cst_47 : f32 to vector<1x128xf32>
    %135 = arith.mulf %134, %133 : vector<1x128xf32>
    %136 = arith.addf %130, %135 : vector<1x128xf32>
    %137 = arith.negf %136 : vector<1x128xf32>
    %138 = math.exp %137 : vector<1x128xf32>
    %cst_48 = arith.constant 1.000000e+00 : f32
    %139 = vector.broadcast %cst_48 : f32 to vector<1x128xf32>
    %140 = arith.addf %139, %138 : vector<1x128xf32>
    %141 = arith.divf %139, %140 : vector<1x128xf32>
    %c4 = arith.constant 4 : index
    %c0_49 = arith.constant 0 : index
    %c0_50 = arith.constant 0 : index
    %142 = vector.load %arg2[%c4, %c0_49, %c0_50] : memref<8x1x128xf32, #tpu.memory_space<vmem>>, vector<1x1x128xf32>
    %143 = vector.shape_cast %142 : vector<1x1x128xf32> to vector<1x128xf32>
    %144 = vector.broadcast %4 : f32 to vector<1x128xf32>
    %145 = arith.divf %143, %144 : vector<1x128xf32>
    %146 = math.roundeven %145 : vector<1x128xf32>
    %147 = vector.broadcast %9 : f32 to vector<1x128xf32>
    %148 = arith.addf %146, %147 : vector<1x128xf32>
    %cst_51 = arith.constant 0.000000e+00 : f32
    %cst_52 = arith.constant 2.550000e+02 : f32
    %149 = vector.broadcast %cst_51 : f32 to vector<1x128xf32>
    %150 = arith.maximumf %149, %148 : vector<1x128xf32>
    %151 = vector.broadcast %cst_52 : f32 to vector<1x128xf32>
    %152 = arith.minimumf %151, %150 : vector<1x128xf32>
    %153 = vector.broadcast %9 : f32 to vector<1x128xf32>
    %154 = arith.subf %152, %153 : vector<1x128xf32>
    %155 = vector.broadcast %4 : f32 to vector<1x128xf32>
    %156 = arith.mulf %154, %155 : vector<1x128xf32>
    %cst_53 = arith.constant 8.000000e-01 : f32
    %157 = vector.broadcast %cst_53 : f32 to vector<1x128xf32>
    %158 = arith.mulf %157, %156 : vector<1x128xf32>
    %c113_i32_54 = arith.constant 113 : i32
    %159 = tpu.dynamic_rotate %141 by %c113_i32_54 dim 1 : vector<1x128xf32>, i32 -> vector<1x128xf32>
    %c1_i32_55 = arith.constant 1 : i32
    %160 = tpu.dynamic_rotate %141 by %c1_i32_55 dim 1 : vector<1x128xf32>, i32 -> vector<1x128xf32>
    %161 = arith.select %28, %159, %160 : vector<1x128xi1>, vector<1x128xf32>
    %cst_56 = arith.constant 5.000000e-01 : f32
    %162 = vector.broadcast %cst_56 : f32 to vector<1x128xf32>
    %163 = arith.mulf %162, %161 : vector<1x128xf32>
    %164 = arith.addf %158, %163 : vector<1x128xf32>
    %165 = arith.negf %164 : vector<1x128xf32>
    %166 = math.exp %165 : vector<1x128xf32>
    %cst_57 = arith.constant 1.000000e+00 : f32
    %167 = vector.broadcast %cst_57 : f32 to vector<1x128xf32>
    %168 = arith.addf %167, %166 : vector<1x128xf32>
    %169 = arith.divf %167, %168 : vector<1x128xf32>
    %c5 = arith.constant 5 : index
    %c0_58 = arith.constant 0 : index
    %c0_59 = arith.constant 0 : index
    %170 = vector.load %arg2[%c5, %c0_58, %c0_59] : memref<8x1x128xf32, #tpu.memory_space<vmem>>, vector<1x1x128xf32>
    %171 = vector.shape_cast %170 : vector<1x1x128xf32> to vector<1x128xf32>
    %172 = vector.broadcast %4 : f32 to vector<1x128xf32>
    %173 = arith.divf %171, %172 : vector<1x128xf32>
    %174 = math.roundeven %173 : vector<1x128xf32>
    %175 = vector.broadcast %9 : f32 to vector<1x128xf32>
    %176 = arith.addf %174, %175 : vector<1x128xf32>
    %cst_60 = arith.constant 0.000000e+00 : f32
    %cst_61 = arith.constant 2.550000e+02 : f32
    %177 = vector.broadcast %cst_60 : f32 to vector<1x128xf32>
    %178 = arith.maximumf %177, %176 : vector<1x128xf32>
    %179 = vector.broadcast %cst_61 : f32 to vector<1x128xf32>
    %180 = arith.minimumf %179, %178 : vector<1x128xf32>
    %181 = vector.broadcast %9 : f32 to vector<1x128xf32>
    %182 = arith.subf %180, %181 : vector<1x128xf32>
    %183 = vector.broadcast %4 : f32 to vector<1x128xf32>
    %184 = arith.mulf %182, %183 : vector<1x128xf32>
    %cst_62 = arith.constant 8.000000e-01 : f32
    %185 = vector.broadcast %cst_62 : f32 to vector<1x128xf32>
    %186 = arith.mulf %185, %184 : vector<1x128xf32>
    %c113_i32_63 = arith.constant 113 : i32
    %187 = tpu.dynamic_rotate %169 by %c113_i32_63 dim 1 : vector<1x128xf32>, i32 -> vector<1x128xf32>
    %c1_i32_64 = arith.constant 1 : i32
    %188 = tpu.dynamic_rotate %169 by %c1_i32_64 dim 1 : vector<1x128xf32>, i32 -> vector<1x128xf32>
    %189 = arith.select %28, %187, %188 : vector<1x128xi1>, vector<1x128xf32>
    %cst_65 = arith.constant 5.000000e-01 : f32
    %190 = vector.broadcast %cst_65 : f32 to vector<1x128xf32>
    %191 = arith.mulf %190, %189 : vector<1x128xf32>
    %192 = arith.addf %186, %191 : vector<1x128xf32>
    %193 = arith.negf %192 : vector<1x128xf32>
    %194 = math.exp %193 : vector<1x128xf32>
    %cst_66 = arith.constant 1.000000e+00 : f32
    %195 = vector.broadcast %cst_66 : f32 to vector<1x128xf32>
    %196 = arith.addf %195, %194 : vector<1x128xf32>
    %197 = arith.divf %195, %196 : vector<1x128xf32>
    %c6 = arith.constant 6 : index
    %c0_67 = arith.constant 0 : index
    %c0_68 = arith.constant 0 : index
    %198 = vector.load %arg2[%c6, %c0_67, %c0_68] : memref<8x1x128xf32, #tpu.memory_space<vmem>>, vector<1x1x128xf32>
    %199 = vector.shape_cast %198 : vector<1x1x128xf32> to vector<1x128xf32>
    %200 = vector.broadcast %4 : f32 to vector<1x128xf32>
    %201 = arith.divf %199, %200 : vector<1x128xf32>
    %202 = math.roundeven %201 : vector<1x128xf32>
    %203 = vector.broadcast %9 : f32 to vector<1x128xf32>
    %204 = arith.addf %202, %203 : vector<1x128xf32>
    %cst_69 = arith.constant 0.000000e+00 : f32
    %cst_70 = arith.constant 2.550000e+02 : f32
    %205 = vector.broadcast %cst_69 : f32 to vector<1x128xf32>
    %206 = arith.maximumf %205, %204 : vector<1x128xf32>
    %207 = vector.broadcast %cst_70 : f32 to vector<1x128xf32>
    %208 = arith.minimumf %207, %206 : vector<1x128xf32>
    %209 = vector.broadcast %9 : f32 to vector<1x128xf32>
    %210 = arith.subf %208, %209 : vector<1x128xf32>
    %211 = vector.broadcast %4 : f32 to vector<1x128xf32>
    %212 = arith.mulf %210, %211 : vector<1x128xf32>
    %cst_71 = arith.constant 8.000000e-01 : f32
    %213 = vector.broadcast %cst_71 : f32 to vector<1x128xf32>
    %214 = arith.mulf %213, %212 : vector<1x128xf32>
    %c113_i32_72 = arith.constant 113 : i32
    %215 = tpu.dynamic_rotate %197 by %c113_i32_72 dim 1 : vector<1x128xf32>, i32 -> vector<1x128xf32>
    %c1_i32_73 = arith.constant 1 : i32
    %216 = tpu.dynamic_rotate %197 by %c1_i32_73 dim 1 : vector<1x128xf32>, i32 -> vector<1x128xf32>
    %217 = arith.select %28, %215, %216 : vector<1x128xi1>, vector<1x128xf32>
    %cst_74 = arith.constant 5.000000e-01 : f32
    %218 = vector.broadcast %cst_74 : f32 to vector<1x128xf32>
    %219 = arith.mulf %218, %217 : vector<1x128xf32>
    %220 = arith.addf %214, %219 : vector<1x128xf32>
    %221 = arith.negf %220 : vector<1x128xf32>
    %222 = math.exp %221 : vector<1x128xf32>
    %cst_75 = arith.constant 1.000000e+00 : f32
    %223 = vector.broadcast %cst_75 : f32 to vector<1x128xf32>
    %224 = arith.addf %223, %222 : vector<1x128xf32>
    %225 = arith.divf %223, %224 : vector<1x128xf32>
    %c7 = arith.constant 7 : index
    %c0_76 = arith.constant 0 : index
    %c0_77 = arith.constant 0 : index
    %226 = vector.load %arg2[%c7, %c0_76, %c0_77] : memref<8x1x128xf32, #tpu.memory_space<vmem>>, vector<1x1x128xf32>
    %227 = vector.shape_cast %226 : vector<1x1x128xf32> to vector<1x128xf32>
    %228 = vector.broadcast %4 : f32 to vector<1x128xf32>
    %229 = arith.divf %227, %228 : vector<1x128xf32>
    %230 = math.roundeven %229 : vector<1x128xf32>
    %231 = vector.broadcast %9 : f32 to vector<1x128xf32>
    %232 = arith.addf %230, %231 : vector<1x128xf32>
    %cst_78 = arith.constant 0.000000e+00 : f32
    %cst_79 = arith.constant 2.550000e+02 : f32
    %233 = vector.broadcast %cst_78 : f32 to vector<1x128xf32>
    %234 = arith.maximumf %233, %232 : vector<1x128xf32>
    %235 = vector.broadcast %cst_79 : f32 to vector<1x128xf32>
    %236 = arith.minimumf %235, %234 : vector<1x128xf32>
    %237 = vector.broadcast %9 : f32 to vector<1x128xf32>
    %238 = arith.subf %236, %237 : vector<1x128xf32>
    %239 = vector.broadcast %4 : f32 to vector<1x128xf32>
    %240 = arith.mulf %238, %239 : vector<1x128xf32>
    %cst_80 = arith.constant 8.000000e-01 : f32
    %241 = vector.broadcast %cst_80 : f32 to vector<1x128xf32>
    %242 = arith.mulf %241, %240 : vector<1x128xf32>
    %c113_i32_81 = arith.constant 113 : i32
    %243 = tpu.dynamic_rotate %225 by %c113_i32_81 dim 1 : vector<1x128xf32>, i32 -> vector<1x128xf32>
    %c1_i32_82 = arith.constant 1 : i32
    %244 = tpu.dynamic_rotate %225 by %c1_i32_82 dim 1 : vector<1x128xf32>, i32 -> vector<1x128xf32>
    %245 = arith.select %28, %243, %244 : vector<1x128xi1>, vector<1x128xf32>
    %cst_83 = arith.constant 5.000000e-01 : f32
    %246 = vector.broadcast %cst_83 : f32 to vector<1x128xf32>
    %247 = arith.mulf %246, %245 : vector<1x128xf32>
    %248 = arith.addf %242, %247 : vector<1x128xf32>
    %249 = arith.negf %248 : vector<1x128xf32>
    %250 = math.exp %249 : vector<1x128xf32>
    %cst_84 = arith.constant 1.000000e+00 : f32
    %251 = vector.broadcast %cst_84 : f32 to vector<1x128xf32>
    %252 = arith.addf %251, %250 : vector<1x128xf32>
    %253 = arith.divf %251, %252 : vector<1x128xf32>
    %c0_85 = arith.constant 0 : index
    %c0_86 = arith.constant 0 : index
    %254 = vector.load %arg4[%c0_85, %c0_86] : memref<128x256xf32, #tpu.memory_space<vmem>>, vector<128x256xf32>
    %cst_87 = arith.constant dense<0.000000e+00> : vector<1x256xf32>
    %255 = tpu.matmul %253, %254, %cst_87 {dimension_numbers = #tpu.dot_dimension_numbers<[1], [0], [0], [1], [0, 0, 1, 1], [], []>} : vector<1x128xf32>, vector<128x256xf32>, vector<1x256xf32> -> vector<1x256xf32>
    %cst_88 = arith.constant 0.000000e+00 : f32
    %256 = vector.broadcast %cst_88 : f32 to vector<1x256xf32>
    %257 = arith.maximumf %255, %256 : vector<1x256xf32>
    %c0_89 = arith.constant 0 : index
    %c0_90 = arith.constant 0 : index
    %258 = vector.load %arg5[%c0_89, %c0_90] : memref<256x128xf32, #tpu.memory_space<vmem>>, vector<256x128xf32>
    %cst_91 = arith.constant dense<0.000000e+00> : vector<1x128xf32>
    %259 = tpu.matmul %257, %258, %cst_91 {dimension_numbers = #tpu.dot_dimension_numbers<[1], [0], [0], [1], [0, 0, 1, 1], [], []>} : vector<1x256xf32>, vector<256x128xf32>, vector<1x128xf32> -> vector<1x128xf32>
    %c0_92 = arith.constant 0 : index
    %c0_93 = arith.constant 0 : index
    %260 = vector.load %arg6[%c0_92, %c0_93] : memref<1x128xf32, #tpu.memory_space<vmem>>, vector<1x128xf32>
    %261 = arith.addf %259, %260 : vector<1x128xf32>
    %c0_94 = arith.constant 0 : index
    %c0_95 = arith.constant 0 : index
    %262 = vector.load %arg7[%c0_94, %c0_95] : memref<1x128xf32, #tpu.memory_space<vmem>>, vector<1x128xf32>
    tpu.vector_store %arg7[%c0_94, %c0_95], %261 {strides = array<i32>} : memref<1x128xf32, #tpu.memory_space<vmem>>, vector<1x128xf32>,
    return
  }
  func.func @transform_0(%arg0: i32) -> (i32, i32) {
    %c0_i32 = arith.constant 0 : i32
    %c0_i32_0 = arith.constant 0 : i32
    %c0_i32_1 = arith.constant 0 : i32
    return %c0_i32, %c0_i32_0 : i32, i32
  }
  func.func @transform_1(%arg0: i32) -> (i32, i32, i32) {
    %c0_i32 = arith.constant 0 : i32
    %c0_i32_0 = arith.constant 0 : i32
    %c0_i32_1 = arith.constant 0 : i32
    return %c0_i32, %arg0, %c0_i32_0 : i32, i32, i32
  }
  func.func @transform_2(%arg0: i32) -> (i32, i32) {
    %c0_i32 = arith.constant 0 : i32
    %c0_i32_0 = arith.constant 0 : i32
    return %arg0, %c0_i32 : i32, i32
  }
  func.func @transform_3(%arg0: i32) -> (i32, i32) {
    %c0_i32 = arith.constant 0 : i32
    %c0_i32_0 = arith.constant 0 : i32
    %c0_i32_1 = arith.constant 0 : i32
    return %c0_i32, %c0_i32_0 : i32, i32
  }
  func.func @transform_4(%arg0: i32) -> (i32, i32) {
    %c0_i32 = arith.constant 0 : i32
    %c0_i32_0 = arith.constant 0 : i32
    %c0_i32_1 = arith.constant 0 : i32
    return %c0_i32, %c0_i32_0 : i32, i32
  }
  func.func @transform_5(%arg0: i32) -> (i32, i32) {
    %c0_i32 = arith.constant 0 : i32
    %c0_i32_0 = arith.constant 0 : i32
    %c0_i32_1 = arith.constant 0 : i32
    return %c0_i32, %c0_i32_0 : i32, i32
  }
  func.func @transform_6(%arg0: i32) -> (i32, i32) {
    %c0_i32 = arith.constant 0 : i32
    %c0_i32_0 = arith.constant 0 : i32
    return %arg0, %c0_i32 : i32, i32
  }
}

</mosaic_0001>

<llo_original>
// kernel: ori_qdfr_system.1
$region0: #{ori_qdfr_system.1}
  #allocation0 [shape = 'u32[]', space=smem, size = 0x4, offset = 0x4, fixed_abs, tag = 'smem constant byte address 0x4 - core index']
  #allocation1 [shape = 'u32[144,128]{1,0:T(1,128)}', space=vmem, size = 0x12000, scoped, tag = 'internal scratch']
  %s0 = inlined_call_operand.vmem [shape: f32[1,2], index: 0, kind: input, shape index: {}]
  %s1 = inlined_call_operand.vmem [shape: f32[8,1,128], index: 1, kind: input, shape index: {}]
  %s2 = inlined_call_operand.vmem [shape: f32[1,128], index: 2, kind: input, shape index: {}]
  %s3 = inlined_call_operand.vmem [shape: f32[128,256], index: 3, kind: input, shape index: {}]
  %s4 = inlined_call_operand.vmem [shape: f32[256,128], index: 4, kind: input, shape index: {}]
  %s5 = inlined_call_operand.vmem [shape: f32[1,128], index: 5, kind: input, shape index: {}]
  %s6 = inlined_call_operand.vmem [shape: f32[1,128], index: 6, kind: output, shape index: {}]
  %s7 = sld [smem:[#allocation0]]
  $region38: #{ori_qdfr_system.1} parent=0
    _
  %s9 = ssub.s32 1, %s7
  %s10 = scalar_select 0, %s9, %s7
  $region1: #{ori_qdfr_system.1} parent=0
    #allocation2 [shape = 'u8[512]{0}', space=smem, size = 0x200, scoped, tag = 'input window, operand 0, single buffered']
    #allocation3 [shape = 's32[1]{0}', space=sflag, size = 0x4, scoped, tag = 'scoped memory for ori_qdfr_system.1']
    %11 = vsyncpa [#allocation3], 0
    // Predicated region
    $region2: #{ori_qdfr_system.1} parent=1 // pred_check
      _
    $region3: #{ori_qdfr_system.1} parent=1 // pred_check_branch
      %13 = sbr.rel (0) target = $region5
    $region4: #{ori_qdfr_system.1} parent=1 // pred_region
      %s15 = ssub.s32 16, 16
      %16 = vsyncadd [#allocation3], %s15
      %s18 = sshll.u32 %s0, 4
      %s19 = int_to_ptr.vmem [resolvable:$true] %s18
      %21 = dma.vmem_to_smem %s19, 16, [#allocation2], [#allocation3]
    $region5: #{ori_qdfr_system.1} parent=1 // pred_fallthru
      _
    // Predicated region
    $region6: #{ori_qdfr_system.1} parent=1 // pred_check
      _
    $region7: #{ori_qdfr_system.1} parent=1 // pred_check_branch
      %23 = sbr.rel (0) target = $region9
    $region8: #{ori_qdfr_system.1} parent=1 // pred_region
      _
    $region9: #{ori_qdfr_system.1} parent=1 // pred_fallthru
      _
    // Predicated region
    $region10: #{ori_qdfr_system.1} parent=1 // pred_check
      _
    $region11: #{ori_qdfr_system.1} parent=1 // pred_check_branch
      %25 = sbr.rel (0) target = $region13
    $region12: #{ori_qdfr_system.1} parent=1 // pred_region
      _
    $region13: #{ori_qdfr_system.1} parent=1 // pred_fallthru
      _
    // Predicated region
    $region14: #{ori_qdfr_system.1} parent=1 // pred_check
      _
    $region15: #{ori_qdfr_system.1} parent=1 // pred_check_branch
      %27 = sbr.rel (0) target = $region17
    $region16: #{ori_qdfr_system.1} parent=1 // pred_region
      _
    $region17: #{ori_qdfr_system.1} parent=1 // pred_fallthru
      _
    // Predicated region
    $region18: #{ori_qdfr_system.1} parent=1 // pred_check
      _
    $region19: #{ori_qdfr_system.1} parent=1 // pred_check_branch
      %29 = sbr.rel (0) target = $region21
    $region20: #{ori_qdfr_system.1} parent=1 // pred_region
      _
    $region21: #{ori_qdfr_system.1} parent=1 // pred_fallthru
      _
    // Predicated region
    $region22: #{ori_qdfr_system.1} parent=1 // pred_check
      _
    $region23: #{ori_qdfr_system.1} parent=1 // pred_check_branch
      %31 = sbr.rel (0) target = $region25
    $region24: #{ori_qdfr_system.1} parent=1 // pred_region
      _
    $region25: #{ori_qdfr_system.1} parent=1 // pred_fallthru
      _
    // Predicated region
    $region26: #{ori_qdfr_system.1} parent=1 // pred_check
      _
    $region27: #{ori_qdfr_system.1} parent=1 // pred_check_branch
      %33 = sbr.rel (0) target = $region29
    $region28: #{ori_qdfr_system.1} parent=1 // pred_region
      %34 = dma.done [#allocation3], 16
    $region29: #{ori_qdfr_system.1} parent=1 // pred_fallthru
      _
    %35 = sfence
    %s36 = sld [smem:[#allocation2]]
    %s37 = sld [smem:[#allocation2 + $0x1]]
    %s38 = ssub.f32 %s37, %s36
    %v39 = vrcp.pop 255.0
    %s40 = vtos %v39
    %s41 = smul.f32 %s38, %s40
    %s42 = smax.f32 %s41, 1.1920929e-07
    %s43 = ssub.f32 0.0, %s36
    %v44 = vstv %s42
    %v45 = vrcp.pop %v44
    %s46 = vtos %v45
    %s47 = smul.f32 %s43, %s46
    %s48 = scvt.f32.s32 %s47
    %s49 = scvt.s32.f32 %s48
    %s50 = sand.u32 2147483647, %s49
    %s51 = sand.u32 %s47, 2147483648
    %s52 = sor.u32 %s50, %s51
    %s53 = sand.u32 2147483647, %s47
    %p54 = scmp.lt.f32.partialorder %s53, 2.1474836e+09
    %s55 = scalar_select %p54, %s52, %s47
    %s56 = smax.f32 %s55, 0.0
    %s57 = smin.f32 %s56, 255.0
    %v58 = vlaneseq
    %v59 = vand.u32 %v58, 127
    %vm60 = vcmp.lt.s32.totalorder %v59, 0
    %v61 = vsub.s32 0, %v59
    %v62 = vsel %vm60, %v61, %v59
    %v63 = vshrl.u32 %v62, 4
    %v64 = vand.u32 %v62, 15
    %v65 = vsub.s32 0, %v64
    %v66 = vsel %vm60, %v65, %v64
    %vm67 = vcmp.ne.s32.totalorder %v66, 0
    %vm68 = vcmp.lt.s32.totalorder %v66, 0
    %vm69 = vmand %vm68, %vm67
    %v70 = vadd.s32 %v66, 16
    %v71 = vsel %vm69, %v70, %v66
    %vm72 = vcmp.eq.s32.totalorder %v71, 0
    %v73 = vld [vmem:[%s2] sm:$0x1]
    %v74 = vld [vmem:[%s1] sm:$0x1]
    %v75 = vstv %s42
    %v76 = vrcp.pop %v75
    %v77 = vmul.f32 %v74, %v76
    %v78 = vround.ne.pseudo %v77
    %v79 = vstv %s57
    %v80 = vadd.f32 %v78, %v79
    %v81 = vmax.f32 %v80, 0.0
    %v82 = vmin.f32 %v81, 255.0
    %v83 = vsub.f32 %v82, %v79
    %v84 = vmul.f32 %v83, %v75
    %v85 = vmul.f32 %v84, 0.8
    %86 = vrot.lane.b32.xlu0 %v73, 113
    %v87 = vpop.permute.xlu0 %86
    %88 = vrot.lane.b32.xlu0 %v73, 1
    %v89 = vpop.permute.xlu0 %88
    %v90 = vsel %vm72, %v87, %v89
    %v91 = vmul.f32 %v90, 0.5
    %v92 = vadd.f32 %v85, %v91
    %v93 = vxor.u32 %v92, 2147483648
    %v94 = vmul.f32 %v93, 1.442695
    %v95 = vpow.pop %v94
    %v96 = vadd.f32 %v95, 1.0
    %v97 = vrcp.pop %v96
    %v98 = vmul.f32 1.0, %v97
    %s99 = scalar_lea.vmem %s1, 1
    %v100 = vld [vmem:[%s99] sm:$0x1]
    %v101 = vmul.f32 %v100, %v76
    %v102 = vround.ne.pseudo %v101
    %v103 = vadd.f32 %v102, %v79
    %v104 = vmax.f32 %v103, 0.0
    %v105 = vmin.f32 %v104, 255.0
    %v106 = vsub.f32 %v105, %v79
    %v107 = vmul.f32 %v106, %v75
    %v108 = vmul.f32 %v107, 0.8
    %109 = vrot.lane.b32.xlu0 %v98, 113
    %v110 = vpop.permute.xlu0 %109
    %111 = vrot.lane.b32.xlu0 %v98, 1
    %v112 = vpop.permute.xlu0 %111
    %v113 = vsel %vm72, %v110, %v112
    %v114 = vmul.f32 %v113, 0.5
    %v115 = vadd.f32 %v108, %v114
    %v116 = vxor.u32 %v115, 2147483648
    %v117 = vmul.f32 %v116, 1.442695
    %v118 = vpow.pop %v117
    %v119 = vadd.f32 %v118, 1.0
    %v120 = vrcp.pop %v119
    %v121 = vmul.f32 1.0, %v120
    %s122 = scalar_lea.vmem %s1, 2
    %v123 = vld [vmem:[%s122] sm:$0x1]
    %v124 = vmul.f32 %v123, %v76
    %v125 = vround.ne.pseudo %v124
    %v126 = vadd.f32 %v125, %v79
    %v127 = vmax.f32 %v126, 0.0
    %v128 = vmin.f32 %v127, 255.0
    %v129 = vsub.f32 %v128, %v79
    %v130 = vmul.f32 %v129, %v75
    %v131 = vmul.f32 %v130, 0.8
    %132 = vrot.lane.b32.xlu0 %v121, 113
    %v133 = vpop.permute.xlu0 %132
    %134 = vrot.lane.b32.xlu0 %v121, 1
    %v135 = vpop.permute.xlu0 %134
    %v136 = vsel %vm72, %v133, %v135
    %v137 = vmul.f32 %v136, 0.5
    %v138 = vadd.f32 %v131, %v137
    %v139 = vxor.u32 %v138, 2147483648
    %v140 = vmul.f32 %v139, 1.442695
    %v141 = vpow.pop %v140
    %v142 = vadd.f32 %v141, 1.0
    %v143 = vrcp.pop %v142
    %v144 = vmul.f32 1.0, %v143
    %s145 = scalar_lea.vmem %s1, 3
    %v146 = vld [vmem:[%s145] sm:$0x1]
    %v147 = vmul.f32 %v146, %v76
    %v148 = vround.ne.pseudo %v147
    %v149 = vadd.f32 %v148, %v79
    %v150 = vmax.f32 %v149, 0.0
    %v151 = vmin.f32 %v150, 255.0
    %v152 = vsub.f32 %v151, %v79
    %v153 = vmul.f32 %v152, %v75
    %v154 = vmul.f32 %v153, 0.8
    %155 = vrot.lane.b32.xlu0 %v144, 113
    %v156 = vpop.permute.xlu0 %155
    %157 = vrot.lane.b32.xlu0 %v144, 1
    %v158 = vpop.permute.xlu0 %157
    %v159 = vsel %vm72, %v156, %v158
    %v160 = vmul.f32 %v159, 0.5
    %v161 = vadd.f32 %v154, %v160
    %v162 = vxor.u32 %v161, 2147483648
    %v163 = vmul.f32 %v162, 1.442695
    %v164 = vpow.pop %v163
    %v165 = vadd.f32 %v164, 1.0
    %v166 = vrcp.pop %v165
    %v167 = vmul.f32 1.0, %v166
    %s168 = scalar_lea.vmem %s1, 4
    %v169 = vld [vmem:[%s168] sm:$0x1]
    %v170 = vmul.f32 %v169, %v76
    %v171 = vround.ne.pseudo %v170
    %v172 = vadd.f32 %v171, %v79
    %v173 = vmax.f32 %v172, 0.0
    %v174 = vmin.f32 %v173, 255.0
    %v175 = vsub.f32 %v174, %v79
    %v176 = vmul.f32 %v175, %v75
    %v177 = vmul.f32 %v176, 0.8
    %178 = vrot.lane.b32.xlu0 %v167, 113
    %v179 = vpop.permute.xlu0 %178
    %180 = vrot.lane.b32.xlu0 %v167, 1
    %v181 = vpop.permute.xlu0 %180
    %v182 = vsel %vm72, %v179, %v181
    %v183 = vmul.f32 %v182, 0.5
    %v184 = vadd.f32 %v177, %v183
    %v185 = vxor.u32 %v184, 2147483648
    %v186 = vmul.f32 %v185, 1.442695
    %v187 = vpow.pop %v186
    %v188 = vadd.f32 %v187, 1.0
    %v189 = vrcp.pop %v188
    %v190 = vmul.f32 1.0, %v189
    %s191 = scalar_lea.vmem %s1, 5
    %v192 = vld [vmem:[%s191] sm:$0x1]
    %v193 = vmul.f32 %v192, %v76
    %v194 = vround.ne.pseudo %v193
    %v195 = vadd.f32 %v194, %v79
    %v196 = vmax.f32 %v195, 0.0
    %v197 = vmin.f32 %v196, 255.0
    %v198 = vsub.f32 %v197, %v79
    %v199 = vmul.f32 %v198, %v75
    %v200 = vmul.f32 %v199, 0.8
    %201 = vrot.lane.b32.xlu0 %v190, 113
    %v202 = vpop.permute.xlu0 %201
    %203 = vrot.lane.b32.xlu0 %v190, 1
    %v204 = vpop.permute.xlu0 %203
    %v205 = vsel %vm72, %v202, %v204
    %v206 = vmul.f32 %v205, 0.5
    %v207 = vadd.f32 %v200, %v206
    %v208 = vxor.u32 %v207, 2147483648
    %v209 = vmul.f32 %v208, 1.442695
    %v210 = vpow.pop %v209
    %v211 = vadd.f32 %v210, 1.0
    %v212 = vrcp.pop %v211
    %v213 = vmul.f32 1.0, %v212
    %s214 = scalar_lea.vmem %s1, 6
    %v215 = vld [vmem:[%s214] sm:$0x1]
    %v216 = vmul.f32 %v215, %v76
    %v217 = vround.ne.pseudo %v216
    %v218 = vadd.f32 %v217, %v79
    %v219 = vmax.f32 %v218, 0.0
    %v220 = vmin.f32 %v219, 255.0
    %v221 = vsub.f32 %v220, %v79
    %v222 = vmul.f32 %v221, %v75
    %v223 = vmul.f32 %v222, 0.8
    %224 = vrot.lane.b32.xlu0 %v213, 113
    %v225 = vpop.permute.xlu0 %224
    %226 = vrot.lane.b32.xlu0 %v213, 1
    %v227 = vpop.permute.xlu0 %226
    %v228 = vsel %vm72, %v225, %v227
    %v229 = vmul.f32 %v228, 0.5
    %v230 = vadd.f32 %v223, %v229
    %v231 = vxor.u32 %v230, 2147483648
    %v232 = vmul.f32 %v231, 1.442695
    %v233 = vpow.pop %v232
    %v234 = vadd.f32 %v233, 1.0
    %v235 = vrcp.pop %v234
    %v236 = vmul.f32 1.0, %v235
    %s237 = scalar_lea.vmem %s1, 7
    %v238 = vld [vmem:[%s237] sm:$0x1]
    %v239 = vmul.f32 %v238, %v76
    %v240 = vround.ne.pseudo %v239
    %v241 = vadd.f32 %v240, %v79
    %v242 = vmax.f32 %v241, 0.0
    %v243 = vmin.f32 %v242, 255.0
    %v244 = vsub.f32 %v243, %v79
    %v245 = vmul.f32 %v244, %v75
    %v246 = vmul.f32 %v245, 0.8
    %247 = vrot.lane.b32.xlu0 %v236, 113
    %v248 = vpop.permute.xlu0 %247
    %249 = vrot.lane.b32.xlu0 %v236, 1
    %v250 = vpop.permute.xlu0 %249
    %v251 = vsel %vm72, %v248, %v250
    %v252 = vmul.f32 %v251, 0.5
    %v253 = vadd.f32 %v246, %v252
    %v254 = vxor.u32 %v253, 2147483648
    %v255 = vmul.f32 %v254, 1.442695
    %v256 = vpow.pop %v255
    %v257 = vadd.f32 %v256, 1.0
    %v258 = vrcp.pop %v257
    %v259 = vmul.f32 1.0, %v258
    %v260 = vld [vmem:[%s3] sm:$0xff]
    %v261 = vld [vmem:[%s3 + $0x8] sm:$0xff]
    %v262 = vld [vmem:[%s3 + $0x10] sm:$0xff]
    %v263 = vld [vmem:[%s3 + $0x18] sm:$0xff]
    %v264 = vld [vmem:[%s3 + $0x20] sm:$0xff]
    %v265 = vld [vmem:[%s3 + $0x28] sm:$0xff]
    %v266 = vld [vmem:[%s3 + $0x30] sm:$0xff]
    %v267 = vld [vmem:[%s3 + $0x38] sm:$0xff]
    %v268 = vld [vmem:[%s3 + $0x40] sm:$0xff]
    %v269 = vld [vmem:[%s3 + $0x48] sm:$0xff]
    %v270 = vld [vmem:[%s3 + $0x50] sm:$0xff]
    %v271 = vld [vmem:[%s3 + $0x58] sm:$0xff]
    %v272 = vld [vmem:[%s3 + $0x60] sm:$0xff]
    %v273 = vld [vmem:[%s3 + $0x68] sm:$0xff]
    %v274 = vld [vmem:[%s3 + $0x70] sm:$0xff]
    %v275 = vld [vmem:[%s3 + $0x78] sm:$0xff]
    %v276 = vld [vmem:[%s3 + $0x80] sm:$0xff]
    %v277 = vld [vmem:[%s3 + $0x88] sm:$0xff]
    %v278 = vld [vmem:[%s3 + $0x90] sm:$0xff]
    %v279 = vld [vmem:[%s3 + $0x98] sm:$0xff]
    %v280 = vld [vmem:[%s3 + $0xa0] sm:$0xff]
    %v281 = vld [vmem:[%s3 + $0xa8] sm:$0xff]
    %v282 = vld [vmem:[%s3 + $0xb0] sm:$0xff]
    %v283 = vld [vmem:[%s3 + $0xb8] sm:$0xff]
    %v284 = vld [vmem:[%s3 + $0xc0] sm:$0xff]
    %v285 = vld [vmem:[%s3 + $0xc8] sm:$0xff]
    %v286 = vld [vmem:[%s3 + $0xd0] sm:$0xff]
    %v287 = vld [vmem:[%s3 + $0xd8] sm:$0xff]
    %v288 = vld [vmem:[%s3 + $0xe0] sm:$0xff]
    %v289 = vld [vmem:[%s3 + $0xe8] sm:$0xff]
    %v290 = vld [vmem:[%s3 + $0xf0] sm:$0xff]
    %v291 = vld [vmem:[%s3 + $0xf8] sm:$0xff]
    %292 = vmatprep.subr.mxu0 %v291
    %293 = vmatpush1.msra.mxu0 %v290
    %294 = vmatprep.subr.mxu0 %v289
    %295 = vmatpush1.msra.mxu0 %v288
    %296 = vmatprep.subr.mxu0 %v287
    %297 = vmatpush1.msra.mxu0 %v286
    %298 = vmatprep.subr.mxu0 %v285
    %299 = vmatpush1.msra.mxu0 %v284
    %300 = vmatprep.subr.mxu0 %v283
    %301 = vmatpush1.msra.mxu0 %v282
    %302 = vmatprep.subr.mxu0 %v281
    %303 = vmatpush1.msra.mxu0 %v280
    %304 = vmatprep.subr.mxu0 %v279
    %305 = vmatpush1.msra.mxu0 %v278
    %306 = vmatprep.subr.mxu0 %v277
    %307 = vmatpush1.msra.mxu0 %v276
    %308 = vmatprep.subr.mxu0 %v275
    %309 = vmatpush1.msra.mxu0 %v274
    %310 = vmatprep.subr.mxu0 %v273
    %311 = vmatpush1.msra.mxu0 %v272
    %312 = vmatprep.subr.mxu0 %v271
    %313 = vmatpush1.msra.mxu0 %v270
    %314 = vmatprep.subr.mxu0 %v269
    %315 = vmatpush1.msra.mxu0 %v268
    %316 = vmatprep.subr.mxu0 %v267
    %317 = vmatpush1.msra.mxu0 %v266
    %318 = vmatprep.subr.mxu0 %v265
    %319 = vmatpush1.msra.mxu0 %v264
    %320 = vmatprep.subr.mxu0 %v263
    %321 = vmatpush1.msra.mxu0 %v262
    %322 = vmatprep.subr.mxu0 %v261
    %323 = vmatpush1.msra.mxu0 %v260
    %324 = vmatprep.subr.mxu0 0.0
    %325 = vmatpush2.msra.mxu0 0.0
    %326 = vmatprep.subr.mxu0 0.0
    %327 = vmatpush2.msra.mxu0 0.0
    %328 = vmatprep.subr.mxu0 0.0
    %329 = vmatpush2.msra.mxu0 0.0
    %330 = vmatprep.subr.mxu0 0.0
    %331 = vmatpush2.msra.mxu0 0.0
    %332 = vmatprep.subr.mxu0 0.0
    %333 = vmatpush2.msra.mxu0 0.0
    %334 = vmatprep.subr.mxu0 0.0
    %335 = vmatpush2.msra.mxu0 0.0
    %336 = vmatprep.subr.mxu0 0.0
    %337 = vmatpush2.msra.mxu0 0.0
    %338 = vmatprep.subr.mxu0 0.0
    %339 = vmatpush2.msra.mxu0 0.0
    %340 = vmatprep.subr.mxu0 0.0
    %341 = vmatpush2.msra.mxu0 0.0
    %342 = vmatprep.subr.mxu0 0.0
    %343 = vmatpush2.msra.mxu0 0.0
    %344 = vmatprep.subr.mxu0 0.0
    %345 = vmatpush2.msra.mxu0 0.0
    %346 = vmatprep.subr.mxu0 0.0
    %347 = vmatpush2.msra.mxu0 0.0
    %348 = vmatprep.subr.mxu0 0.0
    %349 = vmatpush2.msra.mxu0 0.0
    %350 = vmatprep.subr.mxu0 0.0
    %351 = vmatpush2.msra.mxu0 0.0
    %352 = vmatprep.subr.mxu0 0.0
    %353 = vmatpush2.msra.mxu0 0.0
    %354 = vmatprep.subr.mxu0 0.0
    %355 = vmatpush2.msra.mxu0 0.0
    %356 = vmatprep.mubr.f32.mxu0 0.0
    %357 = vmatmul.mubr.f32.gmra.mxu0 %v259
    %v358 = vpop.f32.mrf.mxu0
    %v359 = vadd.f32 0.0, %v358
    %v360 = vpop.f32.mrf.mxu0
    %v361 = vadd.f32 0.0, %v360
    %362 = vdwg.mxu0
    %v363 = vmax.f32 %v359, 0.0
    %v364 = vmax.f32 %v361, 0.0
    %v365 = vld [vmem:[%s4] sm:$0xff]
    %v366 = vld [vmem:[%s4 + $0x8] sm:$0xff]
    %v367 = vld [vmem:[%s4 + $0x10] sm:$0xff]
    %v368 = vld [vmem:[%s4 + $0x18] sm:$0xff]
    %v369 = vld [vmem:[%s4 + $0x20] sm:$0xff]
    %v370 = vld [vmem:[%s4 + $0x28] sm:$0xff]
    %v371 = vld [vmem:[%s4 + $0x30] sm:$0xff]
    %v372 = vld [vmem:[%s4 + $0x38] sm:$0xff]
    %v373 = vld [vmem:[%s4 + $0x40] sm:$0xff]
    %v374 = vld [vmem:[%s4 + $0x48] sm:$0xff]
    %v375 = vld [vmem:[%s4 + $0x50] sm:$0xff]
    %v376 = vld [vmem:[%s4 + $0x58] sm:$0xff]
    %v377 = vld [vmem:[%s4 + $0x60] sm:$0xff]
    %v378 = vld [vmem:[%s4 + $0x68] sm:$0xff]
    %v379 = vld [vmem:[%s4 + $0x70] sm:$0xff]
    %v380 = vld [vmem:[%s4 + $0x78] sm:$0xff]
    %v381 = vld [vmem:[%s4 + $0x80] sm:$0xff]
    %v382 = vld [vmem:[%s4 + $0x88] sm:$0xff]
    %v383 = vld [vmem:[%s4 + $0x90] sm:$0xff]
    %v384 = vld [vmem:[%s4 + $0x98] sm:$0xff]
    %v385 = vld [vmem:[%s4 + $0xa0] sm:$0xff]
    %v386 = vld [vmem:[%s4 + $0xa8] sm:$0xff]
    %v387 = vld [vmem:[%s4 + $0xb0] sm:$0xff]
    %v388 = vld [vmem:[%s4 + $0xb8] sm:$0xff]
    %v389 = vld [vmem:[%s4 + $0xc0] sm:$0xff]
    %v390 = vld [vmem:[%s4 + $0xc8] sm:$0xff]
    %v391 = vld [vmem:[%s4 + $0xd0] sm:$0xff]
    %v392 = vld [vmem:[%s4 + $0xd8] sm:$0xff]
    %v393 = vld [vmem:[%s4 + $0xe0] sm:$0xff]
    %v394 = vld [vmem:[%s4 + $0xe8] sm:$0xff]
    %v395 = vld [vmem:[%s4 + $0xf0] sm:$0xff]
    %v396 = vld [vmem:[%s4 + $0xf8] sm:$0xff]
    %v397 = vld [vmem:[%s5] sm:$0x1]
    %398 = vmatprep.subr.mxu0 0.0
    %399 = vmatpush1.msra.mxu0 %v380
    %400 = vmatprep.subr.mxu0 0.0
    %401 = vmatpush1.msra.mxu0 %v379
    %402 = vmatprep.subr.mxu0 0.0
    %403 = vmatpush1.msra.mxu0 %v378
    %404 = vmatprep.subr.mxu0 0.0
    %405 = vmatpush1.msra.mxu0 %v377
    %406 = vmatprep.subr.mxu0 0.0
    %407 = vmatpush1.msra.mxu0 %v376
    %408 = vmatprep.subr.mxu0 0.0
    %409 = vmatpush1.msra.mxu0 %v375
    %410 = vmatprep.subr.mxu0 0.0
    %411 = vmatpush1.msra.mxu0 %v374
    %412 = vmatprep.subr.mxu0 0.0
    %413 = vmatpush1.msra.mxu0 %v373
    %414 = vmatprep.subr.mxu0 0.0
    %415 = vmatpush1.msra.mxu0 %v372
    %416 = vmatprep.subr.mxu0 0.0
    %417 = vmatpush1.msra.mxu0 %v371
    %418 = vmatprep.subr.mxu0 0.0
    %419 = vmatpush1.msra.mxu0 %v370
    %420 = vmatprep.subr.mxu0 0.0
    %421 = vmatpush1.msra.mxu0 %v369
    %422 = vmatprep.subr.mxu0 0.0
    %423 = vmatpush1.msra.mxu0 %v368
    %424 = vmatprep.subr.mxu0 0.0
    %425 = vmatpush1.msra.mxu0 %v367
    %426 = vmatprep.subr.mxu0 0.0
    %427 = vmatpush1.msra.mxu0 %v366
    %428 = vmatprep.subr.mxu0 0.0
    %429 = vmatpush1.msra.mxu0 %v365
    %430 = vmatprep.subr.mxu0 0.0
    %431 = vmatpush2.msra.mxu0 %v396
    %432 = vmatprep.subr.mxu0 0.0
    %433 = vmatpush2.msra.mxu0 %v395
    %434 = vmatprep.subr.mxu0 0.0
    %435 = vmatpush2.msra.mxu0 %v394
    %436 = vmatprep.subr.mxu0 0.0
    %437 = vmatpush2.msra.mxu0 %v393
    %438 = vmatprep.subr.mxu0 0.0
    %439 = vmatpush2.msra.mxu0 %v392
    %440 = vmatprep.subr.mxu0 0.0
    %441 = vmatpush2.msra.mxu0 %v391
    %442 = vmatprep.subr.mxu0 0.0
    %443 = vmatpush2.msra.mxu0 %v390
    %444 = vmatprep.subr.mxu0 0.0
    %445 = vmatpush2.msra.mxu0 %v389
    %446 = vmatprep.subr.mxu0 0.0
    %447 = vmatpush2.msra.mxu0 %v388
    %448 = vmatprep.subr.mxu0 0.0
    %449 = vmatpush2.msra.mxu0 %v387
    %450 = vmatprep.subr.mxu0 0.0
    %451 = vmatpush2.msra.mxu0 %v386
    %452 = vmatprep.subr.mxu0 0.0
    %453 = vmatpush2.msra.mxu0 %v385
    %454 = vmatprep.subr.mxu0 0.0
    %455 = vmatpush2.msra.mxu0 %v384
    %456 = vmatprep.subr.mxu0 0.0
    %457 = vmatpush2.msra.mxu0 %v383
    %458 = vmatprep.subr.mxu0 0.0
    %459 = vmatpush2.msra.mxu0 %v382
    %460 = vmatprep.subr.mxu0 0.0
    %461 = vmatpush2.msra.mxu0 %v381
    %462 = vmatprep.mubr.f32.mxu0 %v364
    %463 = vmatmul.mubr.f32.gmra.mxu0 %v363
    %v464 = vpop.f32.mrf.mxu0
    %v465 = vadd.f32 %v397, %v464
    %v466 = vpop.f32.mrf.mxu0
    %467 = vdwg.mxu0
    %468 = vst [vmem:[%s6] sm:$0x1] %v465
    // Predicated region
    $region30: #{ori_qdfr_system.1} parent=1 // pred_check
      _
    $region31: #{ori_qdfr_system.1} parent=1 // pred_check_branch
      %470 = sbr.rel (0) target = $region33
    $region32: #{ori_qdfr_system.1} parent=1 // pred_region
      _
    $region33: #{ori_qdfr_system.1} parent=1 // pred_fallthru
      _
    // Predicated region
    $region34: #{ori_qdfr_system.1} parent=1 // pred_check
      _
    $region35: #{ori_qdfr_system.1} parent=1 // pred_check_branch
      %472 = sbr.rel (0) target = $region37
    $region36: #{ori_qdfr_system.1} parent=1 // pred_region
      _
    $region37: #{ori_qdfr_system.1} parent=1 // pred_fallthru
      _
    %473 = vsyncpa [#allocation3], 1

</llo_original>
